<compile_context>
chip_gen: v7x
topology: tpu7x:2x2x1
jax: 0.10.0
libtpu: 0.0.40
codegen_flags: <defaults>
</compile_context>

<pallas_src>
import functools

import jax
import jax.numpy as jnp
from jax.experimental import pallas as pl
from jax.experimental.pallas import tpu as pltpu

LANE = 128  # lane-dense feature width: hidden / output feature dims padded to this


def _round_up(x, m):
    return ((x + m - 1) // m) * m


def _pad2d(a, rows, cols):
    out = jnp.zeros((rows, cols), a.dtype)
    return out.at[: a.shape[0], : a.shape[1]].set(a)


# -----------------------------------------------------------------------------
# Fused encoder kernel
# -----------------------------------------------------------------------------
def _encoder_kernel(a_ref, x_ref, w1_ref, b1_ref, w2_ref, b2_ref,
                    wml_ref, bml_ref, o_ref, xw_ref, h1_ref, h2_ref, *, tm):
    p = pl.program_id(0)  # 0: conv1, 1: conv2, 2: conv_mu | conv_logvar (fused)
    i = pl.program_id(1)  # row tile of A_hat

    # (Re)compute the dense projection  XW = H_prev @ W  once per pass, at the
    # first row tile, and keep it resident in VMEM for all row tiles.
    @pl.when(jnp.logical_and(p == 0, i == 0))
    def _():
        xw_ref[...] = jnp.dot(x_ref[...], w1_ref[...],
                              preferred_element_type=jnp.float32)

    @pl.when(jnp.logical_and(p == 1, i == 0))
    def _():
        xw_ref[...] = jnp.dot(h1_ref[...], w2_ref[...],
                              preferred_element_type=jnp.float32)

    @pl.when(jnp.logical_and(p == 2, i == 0))
    def _():
        xw_ref[...] = jnp.dot(h2_ref[...], wml_ref[...],
                              preferred_element_type=jnp.float32)

    # Aggregation over the graph: rows [i*tm, (i+1)*tm) of A_hat  @  XW.
    # A_hat is bf16 in HBM (bandwidth-bound); accumulate in f32.
    a_tile = a_ref[...].astype(jnp.float32)
    agg = jnp.dot(a_tile, xw_ref[...], preferred_element_type=jnp.float32)

    bias = jnp.where(p == 0, b1_ref[...],
                     jnp.where(p == 1, b2_ref[...], bml_ref[...]))
    out = agg + bias
    out = jnp.where(p < 2, jnp.maximum(out, 0.0), out)  # relu for passes 0, 1 only

    # Keep intermediate activations resident in VMEM (never written to HBM).
    row0 = pl.multiple_of(i * tm, tm)

    @pl.when(p == 0)
    def _():
        h1_ref[pl.ds(row0, tm), :] = out

    @pl.when(p == 1)
    def _():
        h2_ref[pl.ds(row0, tm), :] = out

    # Written every pass; the pass-2 writeback (last in grid order) is final.
    o_ref[...] = out.astype(o_ref.dtype)


# -----------------------------------------------------------------------------
# Wrapper: padding, weight fusion, pallas_call
# -----------------------------------------------------------------------------
def gcn_encoder_forward(params, a_hat, x, *, row_tile=512):
    """Fused VGAE GCN-encoder forward. Returns (mu, logvar)."""
    n, f_in = x.shape
    hid = params["w1"].shape[1]
    out_ch = params["w_mu"].shape[1]
    assert hid <= LANE and 2 * out_ch <= LANE, "padding scheme assumes <=128 features"

    f_pad = _round_up(f_in, LANE)

    # Row tiling of A_hat. tm is a multiple of 16 (bf16 sublane packing); N is
    # padded up to a multiple of tm.  For very large N, shrink row_tile so a
    # double-buffered (tm, n_pad) bf16 panel fits scoped VMEM on all gens.
    tm = max(16, min(_round_up(row_tile, 16), _round_up(n, 16)))
    n_pad = _round_up(n, tm)
    n_tiles = n_pad // tm

    # --- lane-dense, zero-padded operands (plain-JAX glue) -------------------
    a_p = _pad2d(a_hat, n_pad, n_pad).astype(jnp.bfloat16)   # bf16 in HBM
    x_p = _pad2d(x, n_pad, f_pad)
    w1 = _pad2d(params["w1"], f_pad, LANE)
    b1 = _pad2d(params["b1"].reshape(1, -1), 1, LANE)
    w2 = _pad2d(params["w2"], LANE, LANE)
    b2 = _pad2d(params["b2"].reshape(1, -1), 1, LANE)
    # conv_mu / conv_logvar fused: one streamed pass of A_hat serves both heads
    # and the output block stays lane-dense.
    w_ml = _pad2d(jnp.concatenate([params["w_mu"], params["w_lv"]], axis=1),
                  LANE, LANE)
    b_ml = _pad2d(jnp.concatenate([params["b_mu"], params["b_lv"]]).reshape(1, -1),
                  1, LANE)

    kernel = functools.partial(_encoder_kernel, tm=tm)
    full = lambda p_, i_: (0, 0)

    out = pl.pallas_call(
        kernel,
        out_shape=jax.ShapeDtypeStruct((n_pad, LANE), jnp.float32),
        grid_spec=pltpu.PrefetchScalarGridSpec(
            num_scalar_prefetch=0,
            grid=(3, n_tiles),                                   # (pass, row tile)
            in_specs=[
                pl.BlockSpec((tm, n_pad), lambda p_, i_: (i_, 0)),  # A_hat row panel
                pl.BlockSpec((n_pad, f_pad), full),                 # X (resident)
                pl.BlockSpec((f_pad, LANE), full),                  # W1
                pl.BlockSpec((1, LANE), full),                      # b1
                pl.BlockSpec((LANE, LANE), full),                   # W2
                pl.BlockSpec((1, LANE), full),                      # b2
                pl.BlockSpec((LANE, LANE), full),                   # W_mu | W_lv
                pl.BlockSpec((1, LANE), full),                      # b_mu | b_lv
            ],
            out_specs=pl.BlockSpec((tm, LANE), lambda p_, i_: (i_, 0)),
            scratch_shapes=[
                pltpu.VMEM((n_pad, LANE), jnp.float32),   # XW of current pass
                pltpu.VMEM((n_pad, LANE), jnp.float32),   # h1
                pltpu.VMEM((n_pad, LANE), jnp.float32),   # h2
            ],
        ),
        compiler_params=pltpu.CompilerParams(
            # Row axis must stay "arbitrary": pass p+1 consumes VMEM-scratch
            # activations written by ALL row tiles of pass p.
            dimension_semantics=("arbitrary", "arbitrary"),
            vmem_limit_bytes=48 * 1024 * 1024,
        ),
    )(a_p, x_p, w1, b1, w2, b2, w_ml, b_ml)

    mu = out[:n, :out_ch]
    logvar = out[:n, out_ch:2 * out_ch]
    return mu, logvar


# -----------------------------------------------------------------------------
# Plain-JAX glue: normalized adjacency and parameter init
# -----------------------------------------------------------------------------
def gcn_norm_adj(edge_index, num_nodes):
    """Dense A_hat = D^{-1/2} (A + I) D^{-1/2} (duplicate edges deduplicated)."""
    src, dst = edge_index[0], edge_index[1]
    a = jnp.zeros((num_nodes, num_nodes), jnp.float32)
    a = a.at[src, dst].set(1.0)
    a = jnp.maximum(a, jnp.eye(num_nodes, dtype=jnp.float32))  # add self-loops
    deg = a.sum(axis=1)
    dinv = jnp.where(deg > 0, 1.0 / jnp.sqrt(deg), 0.0)
    return dinv[:, None] * a * dinv[None, :]


def glorot(key, shape):
    fan_in, fan_out = shape
    limit = jnp.sqrt(6.0 / (fan_in + fan_out))
    return jax.random.uniform(key, shape, jnp.float32, -limit, limit)


if __name__ == "__main__":
    N = 48            # number of graph nodes
    IN_CH = 8         # in_channels
    OUT_CH = 4        # out_channels  -> hidden = 2 * out_channels = 8
    HID = 2 * OUT_CH
    E = 96            # directed random edges before symmetrization

    key = jax.random.PRNGKey(0)
    (kx, ks, kd, k1, k2, k3, k4, kb1, kb2, kb3, kb4) = jax.random.split(key, 11)

    # Node features [N, IN_CH]
    x = jax.random.normal(kx, (N, IN_CH), jnp.float32)

    # Random symmetric edge_index [2, 2E]
    src = jax.random.randint(ks, (E,), 0, N)
    dst = jax.random.randint(kd, (E,), 0, N)
    edge_index = jnp.stack(
        [jnp.concatenate([src, dst]), jnp.concatenate([dst, src])]
    ).astype(jnp.int32)

    a_hat = gcn_norm_adj(edge_index, N)

    # Glorot weights; small nonzero biases to exercise the bias path.
    params = {
        "w1": glorot(k1, (IN_CH, HID)),
        "b1": 0.1 * jax.random.normal(kb1, (HID,), jnp.float32),
        "w2": glorot(k2, (HID, HID)),
        "b2": 0.1 * jax.random.normal(kb2, (HID,), jnp.float32),
        "w_mu": glorot(k3, (HID, OUT_CH)),
        "b_mu": 0.1 * jax.random.normal(kb3, (OUT_CH,), jnp.float32),
        "w_lv": glorot(k4, (HID, OUT_CH)),
        "b_lv": 0.1 * jax.random.normal(kb4, (OUT_CH,), jnp.float32),
    }

    # TODO(synk): F.dropout(..., training=self.training) — eval mode (identity);
    # stochastic training-mode dropout is not applied in this kernel.
    # Small row tile so the demo exercises several A_hat row tiles per pass.
    mu, logvar = gcn_encoder_forward(params, a_hat, x, row_tile=16)
    jax.block_until_ready((mu, logvar))

    # Plain-JAX reference using the same bf16-rounded A_hat the kernel streams.
    a_ref = a_hat.astype(jnp.bfloat16).astype(jnp.float32)

    def ref_layer(a, h, w, b, relu):
        o = a @ (h @ w) + b
        return jnp.maximum(o, 0.0) if relu else o

    h_r = ref_layer(a_ref, x, params["w1"], params["b1"], True)
    h_r = ref_layer(a_ref, h_r, params["w2"], params["b2"], True)
    mu_r = ref_layer(a_ref, h_r, params["w_mu"], params["b_mu"], False)
    lv_r = ref_layer(a_ref, h_r, params["w_lv"], params["b_lv"], False)

    assert mu.shape == (N, OUT_CH) and logvar.shape == (N, OUT_CH)
    # bf16 A_hat storage + MXU default matmul precision -> allow ~1e-2 drift.
    assert jnp.allclose(mu, mu_r, atol=1e-2, rtol=1e-2), "mu mismatch"
    assert jnp.allclose(logvar, lv_r, atol=1e-2, rtol=1e-2), "logvar mismatch"

    print("KERNEL_OK")
</pallas_src>

<mosaic_0001>
module attributes {stable_mosaic.version = 11 : i64} {
  func.func @_encoder_kernel(%arg0: i32, %arg1: i32, %arg2: memref<16x48xbf16, #tpu.memory_space<vmem>>, %arg3: memref<48x128xf32, #tpu.memory_space<vmem>>, %arg4: memref<128x128xf32, #tpu.memory_space<vmem>>, %arg5: memref<1x128xf32, #tpu.memory_space<vmem>>, %arg6: memref<128x128xf32, #tpu.memory_space<vmem>>, %arg7: memref<1x128xf32, #tpu.memory_space<vmem>>, %arg8: memref<128x128xf32, #tpu.memory_space<vmem>>, %arg9: memref<1x128xf32, #tpu.memory_space<vmem>>, %arg10: memref<16x128xf32, #tpu.memory_space<vmem>>, %arg11: memref<48x128xf32, #tpu.memory_space<vmem>>, %arg12: memref<48x128xf32, #tpu.memory_space<vmem>>, %arg13: memref<48x128xf32, #tpu.memory_space<vmem>>) attributes {dimension_semantics = [#tpu.dimension_semantics<arbitrary>, #tpu.dimension_semantics<arbitrary>], iteration_bounds = array<i64: 3, 3>, scalar_prefetch = 0 : i64, scratch_operands = 3 : i64, tpu.core_type = #tpu.core_type<tc>, window_params = [{transform_indices = @transform_0, window_bounds = array<i64: 16, 48>}, {pipeline_mode = #tpu.pipeline_mode<synchronous>, transform_indices = @transform_1, window_bounds = array<i64: 48, 128>}, {pipeline_mode = #tpu.pipeline_mode<synchronous>, transform_indices = @transform_2, window_bounds = array<i64: 128, 128>}, {pipeline_mode = #tpu.pipeline_mode<synchronous>, transform_indices = @transform_3, window_bounds = array<i64: 1, 128>}, {pipeline_mode = #tpu.pipeline_mode<synchronous>, transform_indices = @transform_4, window_bounds = array<i64: 128, 128>}, {pipeline_mode = #tpu.pipeline_mode<synchronous>, transform_indices = @transform_5, window_bounds = array<i64: 1, 128>}, {pipeline_mode = #tpu.pipeline_mode<synchronous>, transform_indices = @transform_6, window_bounds = array<i64: 128, 128>}, {pipeline_mode = #tpu.pipeline_mode<synchronous>, transform_indices = @transform_7, window_bounds = array<i64: 1, 128>}, {transform_indices = @transform_8, window_bounds = array<i64: 16, 128>}]} {
    %c0_i32 = arith.constant 0 : i32
    %0 = arith.cmpi eq, %arg0, %c0_i32 : i32
    %c0_i32_0 = arith.constant 0 : i32
    %1 = arith.cmpi eq, %arg1, %c0_i32_0 : i32
    %2 = arith.andi %0, %1 : i1
    %3 = arith.extui %2 : i1 to i32
    %c0_i32_1 = arith.constant 0 : i32
    %4 = arith.cmpi ne, %3, %c0_i32_1 : i32
    scf.if %4 {
      %c0_25 = arith.constant 0 : index
      %c0_26 = arith.constant 0 : index
      %41 = vector.load %arg3[%c0_25, %c0_26] : memref<48x128xf32, #tpu.memory_space<vmem>>, vector<48x128xf32>
      %c0_27 = arith.constant 0 : index
      %c0_28 = arith.constant 0 : index
      %42 = vector.load %arg4[%c0_27, %c0_28] : memref<128x128xf32, #tpu.memory_space<vmem>>, vector<128x128xf32>
      %cst_29 = arith.constant dense<0.000000e+00> : vector<48x128xf32>
      %43 = tpu.matmul %41, %42, %cst_29 {dimension_numbers = #tpu.dot_dimension_numbers<[1], [0], [0], [1], [0, 0, 1, 1], [], []>} : vector<48x128xf32>, vector<128x128xf32>, vector<48x128xf32> -> vector<48x128xf32>
      %c0_30 = arith.constant 0 : index
      %c0_31 = arith.constant 0 : index
      %44 = vector.load %arg11[%c0_30, %c0_31] : memref<48x128xf32, #tpu.memory_space<vmem>>, vector<48x128xf32>
      tpu.vector_store %arg11[%c0_30, %c0_31], %43 {strides = array<i32>} : memref<48x128xf32, #tpu.memory_space<vmem>>, vector<48x128xf32>,
    } else {
    }
    %c1_i32 = arith.constant 1 : i32
    %5 = arith.cmpi eq, %arg0, %c1_i32 : i32
    %c0_i32_2 = arith.constant 0 : i32
    %6 = arith.cmpi eq, %arg1, %c0_i32_2 : i32
    %7 = arith.andi %5, %6 : i1
    %8 = arith.extui %7 : i1 to i32
    %c0_i32_3 = arith.constant 0 : i32
    %9 = arith.cmpi ne, %8, %c0_i32_3 : i32
    scf.if %9 {
      %c0_25 = arith.constant 0 : index
      %c0_26 = arith.constant 0 : index
      %41 = vector.load %arg12[%c0_25, %c0_26] : memref<48x128xf32, #tpu.memory_space<vmem>>, vector<48x128xf32>
      %c0_27 = arith.constant 0 : index
      %c0_28 = arith.constant 0 : index
      %42 = vector.load %arg6[%c0_27, %c0_28] : memref<128x128xf32, #tpu.memory_space<vmem>>, vector<128x128xf32>
      %cst_29 = arith.constant dense<0.000000e+00> : vector<48x128xf32>
      %43 = tpu.matmul %41, %42, %cst_29 {dimension_numbers = #tpu.dot_dimension_numbers<[1], [0], [0], [1], [0, 0, 1, 1], [], []>} : vector<48x128xf32>, vector<128x128xf32>, vector<48x128xf32> -> vector<48x128xf32>
      %c0_30 = arith.constant 0 : index
      %c0_31 = arith.constant 0 : index
      %44 = vector.load %arg11[%c0_30, %c0_31] : memref<48x128xf32, #tpu.memory_space<vmem>>, vector<48x128xf32>
      tpu.vector_store %arg11[%c0_30, %c0_31], %43 {strides = array<i32>} : memref<48x128xf32, #tpu.memory_space<vmem>>, vector<48x128xf32>,
    } else {
    }
    %c2_i32 = arith.constant 2 : i32
    %10 = arith.cmpi eq, %arg0, %c2_i32 : i32
    %c0_i32_4 = arith.constant 0 : i32
    %11 = arith.cmpi eq, %arg1, %c0_i32_4 : i32
    %12 = arith.andi %10, %11 : i1
    %13 = arith.extui %12 : i1 to i32
    %c0_i32_5 = arith.constant 0 : i32
    %14 = arith.cmpi ne, %13, %c0_i32_5 : i32
    scf.if %14 {
      %c0_25 = arith.constant 0 : index
      %c0_26 = arith.constant 0 : index
      %41 = vector.load %arg13[%c0_25, %c0_26] : memref<48x128xf32, #tpu.memory_space<vmem>>, vector<48x128xf32>
      %c0_27 = arith.constant 0 : index
      %c0_28 = arith.constant 0 : index
      %42 = vector.load %arg8[%c0_27, %c0_28] : memref<128x128xf32, #tpu.memory_space<vmem>>, vector<128x128xf32>
      %cst_29 = arith.constant dense<0.000000e+00> : vector<48x128xf32>
      %43 = tpu.matmul %41, %42, %cst_29 {dimension_numbers = #tpu.dot_dimension_numbers<[1], [0], [0], [1], [0, 0, 1, 1], [], []>} : vector<48x128xf32>, vector<128x128xf32>, vector<48x128xf32> -> vector<48x128xf32>
      %c0_30 = arith.constant 0 : index
      %c0_31 = arith.constant 0 : index
      %44 = vector.load %arg11[%c0_30, %c0_31] : memref<48x128xf32, #tpu.memory_space<vmem>>, vector<48x128xf32>
      tpu.vector_store %arg11[%c0_30, %c0_31], %43 {strides = array<i32>} : memref<48x128xf32, #tpu.memory_space<vmem>>, vector<48x128xf32>,
    } else {
    }
    %c0 = arith.constant 0 : index
    %c0_6 = arith.constant 0 : index
    %15 = vector.load %arg2[%c0, %c0_6] : memref<16x48xbf16, #tpu.memory_space<vmem>>, vector<16x48xbf16>
    %16 = arith.extf %15 : vector<16x48xbf16> to vector<16x48xf32>
    %c0_7 = arith.constant 0 : index
    %c0_8 = arith.constant 0 : index
    %17 = vector.load %arg11[%c0_7, %c0_8] : memref<48x128xf32, #tpu.memory_space<vmem>>, vector<48x128xf32>
    %cst = arith.constant dense<0.000000e+00> : vector<16x128xf32>
    %18 = tpu.matmul %16, %17, %cst {dimension_numbers = #tpu.dot_dimension_numbers<[1], [0], [0], [1], [0, 0, 1, 1], [], []>} : vector<16x48xf32>, vector<48x128xf32>, vector<16x128xf32> -> vector<16x128xf32>
    %c0_i32_9 = arith.constant 0 : i32
    %19 = arith.cmpi eq, %arg0, %c0_i32_9 : i32
    %c0_10 = arith.constant 0 : index
    %c0_11 = arith.constant 0 : index
    %20 = vector.load %arg5[%c0_10, %c0_11] : memref<1x128xf32, #tpu.memory_space<vmem>>, vector<1x128xf32>
    %c1_i32_12 = arith.constant 1 : i32
    %21 = arith.cmpi eq, %arg0, %c1_i32_12 : i32
    %c0_13 = arith.constant 0 : index
    %c0_14 = arith.constant 0 : index
    %22 = vector.load %arg7[%c0_13, %c0_14] : memref<1x128xf32, #tpu.memory_space<vmem>>, vector<1x128xf32>
    %c0_15 = arith.constant 0 : index
    %c0_16 = arith.constant 0 : index
    %23 = vector.load %arg9[%c0_15, %c0_16] : memref<1x128xf32, #tpu.memory_space<vmem>>, vector<1x128xf32>
    %24 = arith.select %21, %22, %23 : vector<1x128xf32>
    %25 = arith.select %19, %20, %24 : vector<1x128xf32>
    %26 = vector.broadcast %25 : vector<1x128xf32> to vector<16x128xf32>
    %27 = arith.addf %18, %26 : vector<16x128xf32>
    %c2_i32_17 = arith.constant 2 : i32
    %28 = arith.cmpi slt, %arg0, %c2_i32_17 : i32
    %cst_18 = arith.constant 0.000000e+00 : f32
    %29 = vector.broadcast %cst_18 : f32 to vector<16x128xf32>
    %30 = arith.maximumf %27, %29 : vector<16x128xf32>
    %31 = arith.select %28, %30, %27 : vector<16x128xf32>
    %c16_i32 = arith.constant 16 : i32
    %32 = arith.muli %arg1, %c16_i32 : i32
    %33 = tpu.assume_multiple %32, 16 : i32
    %c0_i32_19 = arith.constant 0 : i32
    %34 = arith.cmpi eq, %arg0, %c0_i32_19 : i32
    %35 = arith.extui %34 : i1 to i32
    %c0_i32_20 = arith.constant 0 : i32
    %36 = arith.cmpi ne, %35, %c0_i32_20 : i32
    scf.if %36 {
      %41 = arith.index_cast %33 : i32 to index
      %c0_25 = arith.constant 0 : index
      %42 = vector.load %arg12[%41, %c0_25] : memref<48x128xf32, #tpu.memory_space<vmem>>, vector<16x128xf32>
      tpu.vector_store %arg12[%41, %c0_25], %31 {strides = array<i32>} : memref<48x128xf32, #tpu.memory_space<vmem>>, vector<16x128xf32>,
    } else {
    }
    %c1_i32_21 = arith.constant 1 : i32
    %37 = arith.cmpi eq, %arg0, %c1_i32_21 : i32
    %38 = arith.extui %37 : i1 to i32
    %c0_i32_22 = arith.constant 0 : i32
    %39 = arith.cmpi ne, %38, %c0_i32_22 : i32
    scf.if %39 {
      %41 = arith.index_cast %33 : i32 to index
      %c0_25 = arith.constant 0 : index
      %42 = vector.load %arg13[%41, %c0_25] : memref<48x128xf32, #tpu.memory_space<vmem>>, vector<16x128xf32>
      tpu.vector_store %arg13[%41, %c0_25], %31 {strides = array<i32>} : memref<48x128xf32, #tpu.memory_space<vmem>>, vector<16x128xf32>,
    } else {
    }
    %c0_23 = arith.constant 0 : index
    %c0_24 = arith.constant 0 : index
    %40 = vector.load %arg10[%c0_23, %c0_24] : memref<16x128xf32, #tpu.memory_space<vmem>>, vector<16x128xf32>
    tpu.vector_store %arg10[%c0_23, %c0_24], %31 {strides = array<i32>} : memref<16x128xf32, #tpu.memory_space<vmem>>, vector<16x128xf32>,
    return
  }
  func.func @transform_0(%arg0: i32, %arg1: i32) -> (i32, i32) {
    %c0_i32 = arith.constant 0 : i32
    %c0_i32_0 = arith.constant 0 : i32
    return %arg1, %c0_i32 : i32, i32
  }
  func.func @transform_1(%arg0: i32, %arg1: i32) -> (i32, i32) {
    %c0_i32 = arith.constant 0 : i32
    %c0_i32_0 = arith.constant 0 : i32
    %c0_i32_1 = arith.constant 0 : i32
    return %c0_i32, %c0_i32_0 : i32, i32
  }
  func.func @transform_2(%arg0: i32, %arg1: i32) -> (i32, i32) {
    %c0_i32 = arith.constant 0 : i32
    %c0_i32_0 = arith.constant 0 : i32
    %c0_i32_1 = arith.constant 0 : i32
    return %c0_i32, %c0_i32_0 : i32, i32
  }
  func.func @transform_3(%arg0: i32, %arg1: i32) -> (i32, i32) {
    %c0_i32 = arith.constant 0 : i32
    %c0_i32_0 = arith.constant 0 : i32
    %c0_i32_1 = arith.constant 0 : i32
    return %c0_i32, %c0_i32_0 : i32, i32
  }
  func.func @transform_4(%arg0: i32, %arg1: i32) -> (i32, i32) {
    %c0_i32 = arith.constant 0 : i32
    %c0_i32_0 = arith.constant 0 : i32
    %c0_i32_1 = arith.constant 0 : i32
    return %c0_i32, %c0_i32_0 : i32, i32
  }
  func.func @transform_5(%arg0: i32, %arg1: i32) -> (i32, i32) {
    %c0_i32 = arith.constant 0 : i32
    %c0_i32_0 = arith.constant 0 : i32
    %c0_i32_1 = arith.constant 0 : i32
    return %c0_i32, %c0_i32_0 : i32, i32
  }
  func.func @transform_6(%arg0: i32, %arg1: i32) -> (i32, i32) {
    %c0_i32 = arith.constant 0 : i32
    %c0_i32_0 = arith.constant 0 : i32
    %c0_i32_1 = arith.constant 0 : i32
    return %c0_i32, %c0_i32_0 : i32, i32
  }
  func.func @transform_7(%arg0: i32, %arg1: i32) -> (i32, i32) {
    %c0_i32 = arith.constant 0 : i32
    %c0_i32_0 = arith.constant 0 : i32
    %c0_i32_1 = arith.constant 0 : i32
    return %c0_i32, %c0_i32_0 : i32, i32
  }
  func.func @transform_8(%arg0: i32, %arg1: i32) -> (i32, i32) {
    %c0_i32 = arith.constant 0 : i32
    %c0_i32_0 = arith.constant 0 : i32
    return %arg1, %c0_i32 : i32, i32
  }
}

</mosaic_0001>

<llo_original>
// kernel: tpu_custom_call.1
$region0: #{tpu_custom_call.1}
  #allocation0 [shape = 'u32[]', space=smem, size = 0x4, offset = 0x4, fixed_abs, tag = 'smem constant byte address 0x4 - core index']
  #allocation1 [shape = 'u32[144,128]{1,0:T(1,128)}', space=vmem, size = 0x12000, scoped, tag = 'internal scratch']
  #allocation2 [shape = 'f32[48,128]{1,0:T(8,128)}', space=vmem, size = 0x6000, scoped, tag = 'scratch operand']
  #allocation3 [shape = 'f32[48,128]{1,0:T(8,128)}', space=vmem, size = 0x6000, scoped, tag = 'scratch operand']
  #allocation4 [shape = 'f32[48,128]{1,0:T(8,128)}', space=vmem, size = 0x6000, scoped, tag = 'scratch operand']
  %s0 = inlined_call_operand.hbm [shape: bf16[48,48], index: 0, kind: input, shape index: {}]
  %s1 = inlined_call_operand.hbm [shape: f32[48,128], index: 1, kind: input, shape index: {}]
  %s2 = inlined_call_operand.hbm [shape: f32[128,128], index: 2, kind: input, shape index: {}]
  %s3 = inlined_call_operand.vmem [shape: f32[1,128], index: 3, kind: input, shape index: {}]
  %s4 = inlined_call_operand.hbm [shape: f32[128,128], index: 4, kind: input, shape index: {}]
  %s5 = inlined_call_operand.vmem [shape: f32[1,128], index: 5, kind: input, shape index: {}]
  %s6 = inlined_call_operand.hbm [shape: f32[128,128], index: 6, kind: input, shape index: {}]
  %s7 = inlined_call_operand.vmem [shape: f32[1,128], index: 7, kind: input, shape index: {}]
  %s8 = inlined_call_operand.hbm [shape: f32[48,128], index: 8, kind: output, shape index: {}]
  %s9 = sld [smem:[#allocation0]]
  $region105: #{tpu_custom_call.1} parent=0
    _
  %s11 = ssub.s32 1, %s9
  %s12 = scalar_select 0, %s11, %s9
  $region1: #{tpu_custom_call.1} parent=0
    #allocation5 [shape = 'u8[8192]{0}', space=vmem, size = 0x2000, scoped, tag = 'input window, operand 0']
    #allocation6 [shape = 's32[2]{0}', space=sflag, size = 0x8, scoped, tag = 'scoped memory for tpu_custom_call.1']
    #allocation7 [shape = 's32[2]{0}', space=sflag, size = 0x8, scoped, tag = 'scoped memory for tpu_custom_call.1']
    #allocation8 [shape = 'u8[24576]{0}', space=vmem, size = 0x6000, scoped, tag = 'input window, operand 1, single buffered']
    #allocation9 [shape = 's32[1]{0}', space=sflag, size = 0x4, scoped, tag = 'scoped memory for tpu_custom_call.1']
    #allocation10 [shape = 'u8[65536]{0}', space=vmem, size = 0x10000, scoped, tag = 'input window, operand 2, single buffered']
    #allocation11 [shape = 'u8[65536]{0}', space=vmem, size = 0x10000, scoped, tag = 'input window, operand 4, single buffered']
    #allocation12 [shape = 's32[1]{0}', space=sflag, size = 0x4, scoped, tag = 'scoped memory for tpu_custom_call.1']
    #allocation13 [shape = 'u8[65536]{0}', space=vmem, size = 0x10000, scoped, tag = 'input window, operand 6, single buffered']
    #allocation14 [shape = 'u8[16384]{0}', space=vmem, size = 0x4000, scoped, tag = 'output window, operand 0']
    %13 = vsyncpa [#allocation6], 0
    %s14 = scalar_lea.sflag [#allocation6], 1
    %15 = vsyncpa %s14, 0
    %16 = vsyncpa [#allocation9], 0
    %17 = vsyncpa [#allocation12], 0
    %18 = vsyncpa [#allocation7], 0
    %s19 = scalar_lea.sflag [#allocation7], 1
    %20 = vsyncpa %s19, 0
    loop: start=0, step=1, limit=11
    $region2: #{tpu_custom_call.1} parent=1 // loop_pre_header
      _
    $region3: #{tpu_custom_call.1} parent=1 // loop_header
      %s22 = sphi 0, %s26
      %p23 = scmp.ge.s32.totalorder %s22, 11
      %s29 = sphi 0, %s41
      %s30 = sphi 0, %s37
      %s31 = sphi 0, %s29
      %s32 = sphi 0, %s30
      %s33 = sphi 0, %s31
      %s34 = sphi 0, %s32
      %s44 = sphi 0, %s46
      %s47 = sphi 0, %s44
      %s48 = sphi 0, %s47
      %s64 = sphi 0, %s48
      %s68 = sphi 0, %s68
      %s70 = sphi 0, %s68
      %s71 = sphi 0, %s70
      %s85 = sphi 0, %s71
      %s89 = sphi 0, %s89
      %s91 = sphi 0, %s89
      %s92 = sphi 0, %s91
      %s106 = sphi 0, %s92
      %s110 = sphi 0, %s110
      %s112 = sphi 0, %s110
      %s113 = sphi 0, %s112
      %s127 = sphi 0, %s113
      %s131 = sphi 0, %s131
      %s133 = sphi 0, %s131
      %s134 = sphi 0, %s133
      %s148 = sphi 0, %s134
      %s152 = sphi 0, %s152
      %s154 = sphi 0, %s152
      %s155 = sphi 0, %s154
      %s169 = sphi 0, %s155
      %s173 = sphi 0, %s173
      %s175 = sphi 0, %s173
      %s176 = sphi 0, %s175
      %s190 = sphi 0, %s176
      %s194 = sphi 0, %s194
      %s196 = sphi 0, %s194
      %s197 = sphi 0, %s196
      %s211 = sphi 0, %s197
      %s217 = sphi 0, %s219
      %s220 = sphi 0, %s217
      %s221 = sphi 0, %s220
      %s237 = sphi 0, %s221
    $region4: #{tpu_custom_call.1} parent=1 // loop_header_branch
      %25 = sbr.rel (%p23) target = $region8
    $region5: #{tpu_custom_call.1} parent=1 // loop_body
      %s27 = ssub.s32 %s22, 1
      %s28 = ssub.s32 %s22, 2
      %s35 = sadd.s32 1, %s30
      %p36 = scmp.ge.s32.totalorder %s35, 3
      %s37 = scalar_select %p36, 0, %s35
      %s38 = sadd.s32 1, %s29
      %s39 = scalar_select %p36, %s38, %s29
      %p40 = scmp.ge.s32.totalorder %s39, 3
      %s41 = scalar_select %p40, 0, %s39
      %s42 = ssub.s32 %s30, %s37
      %p43 = scmp.eq.s32.totalorder %s42, 0
      %s45 = sadd.s32 %s44, 1
      %s46 = scalar_select %p43, %s44, %s45
      %p49 = pneg %p43
      %p50 = scmp.eq.s32.totalorder %s22, 8
      %p51 = por %p49, %p50
      %p52 = scmp.ne.s32.totalorder %s44, %s47
      %p53 = scmp.eq.s32.totalorder %s22, 0
      %p54 = por %p52, %p53
      %p55 = scmp.ne.s32.totalorder %s44, %s47
      %p56 = scmp.eq.s32.totalorder %s27, 8
      %p57 = por %p55, %p56
      %p58 = scmp.ne.s32.totalorder %s47, %s48
      %p59 = scmp.eq.s32.totalorder %s27, 0
      %p60 = por %p58, %p59
      %p61 = scmp.ne.s32.totalorder %s47, %s48
      %p62 = scmp.eq.s32.totalorder %s28, 8
      %p63 = por %p61, %p62
      %p65 = scmp.ne.s32.totalorder %s48, %s64
      %p66 = scmp.eq.s32.totalorder %s28, 0
      %p67 = por %p65, %p66
      %s69 = sadd.s32 %s68, 1
      %p72 = scmp.eq.s32.totalorder %s22, 8
      %p73 = scmp.ne.s32.totalorder %s68, %s70
      %p74 = scmp.eq.s32.totalorder %s22, 0
      %p75 = por %p73, %p74
      %p76 = scmp.ne.s32.totalorder %s68, %s70
      %p77 = scmp.eq.s32.totalorder %s27, 8
      %p78 = por %p76, %p77
      %p79 = scmp.ne.s32.totalorder %s70, %s71
      %p80 = scmp.eq.s32.totalorder %s27, 0
      %p81 = por %p79, %p80
      %p82 = scmp.ne.s32.totalorder %s70, %s71
      %p83 = scmp.eq.s32.totalorder %s28, 8
      %p84 = por %p82, %p83
      %p86 = scmp.ne.s32.totalorder %s71, %s85
      %p87 = scmp.eq.s32.totalorder %s28, 0
      %p88 = por %p86, %p87
      %s90 = sadd.s32 %s89, 1
      %p93 = scmp.eq.s32.totalorder %s22, 8
      %p94 = scmp.ne.s32.totalorder %s89, %s91
      %p95 = scmp.eq.s32.totalorder %s22, 0
      %p96 = por %p94, %p95
      %p97 = scmp.ne.s32.totalorder %s89, %s91
      %p98 = scmp.eq.s32.totalorder %s27, 8
      %p99 = por %p97, %p98
      %p100 = scmp.ne.s32.totalorder %s91, %s92
      %p101 = scmp.eq.s32.totalorder %s27, 0
      %p102 = por %p100, %p101
      %p103 = scmp.ne.s32.totalorder %s91, %s92
      %p104 = scmp.eq.s32.totalorder %s28, 8
      %p105 = por %p103, %p104
      %p107 = scmp.ne.s32.totalorder %s92, %s106
      %p108 = scmp.eq.s32.totalorder %s28, 0
      %p109 = por %p107, %p108
      %s111 = sadd.s32 %s110, 1
      %p114 = scmp.eq.s32.totalorder %s22, 8
      %p115 = scmp.ne.s32.totalorder %s110, %s112
      %p116 = scmp.eq.s32.totalorder %s22, 0
      %p117 = por %p115, %p116
      %p118 = scmp.ne.s32.totalorder %s110, %s112
      %p119 = scmp.eq.s32.totalorder %s27, 8
      %p120 = por %p118, %p119
      %p121 = scmp.ne.s32.totalorder %s112, %s113
      %p122 = scmp.eq.s32.totalorder %s27, 0
      %p123 = por %p121, %p122
      %p124 = scmp.ne.s32.totalorder %s112, %s113
      %p125 = scmp.eq.s32.totalorder %s28, 8
      %p126 = por %p124, %p125
      %p128 = scmp.ne.s32.totalorder %s113, %s127
      %p129 = scmp.eq.s32.totalorder %s28, 0
      %p130 = por %p128, %p129
      %s132 = sadd.s32 %s131, 1
      %p135 = scmp.eq.s32.totalorder %s22, 8
      %p136 = scmp.ne.s32.totalorder %s131, %s133
      %p137 = scmp.eq.s32.totalorder %s22, 0
      %p138 = por %p136, %p137
      %p139 = scmp.ne.s32.totalorder %s131, %s133
      %p140 = scmp.eq.s32.totalorder %s27, 8
      %p141 = por %p139, %p140
      %p142 = scmp.ne.s32.totalorder %s133, %s134
      %p143 = scmp.eq.s32.totalorder %s27, 0
      %p144 = por %p142, %p143
      %p145 = scmp.ne.s32.totalorder %s133, %s134
      %p146 = scmp.eq.s32.totalorder %s28, 8
      %p147 = por %p145, %p146
      %p149 = scmp.ne.s32.totalorder %s134, %s148
      %p150 = scmp.eq.s32.totalorder %s28, 0
      %p151 = por %p149, %p150
      %s153 = sadd.s32 %s152, 1
      %p156 = scmp.eq.s32.totalorder %s22, 8
      %p157 = scmp.ne.s32.totalorder %s152, %s154
      %p158 = scmp.eq.s32.totalorder %s22, 0
      %p159 = por %p157, %p158
      %p160 = scmp.ne.s32.totalorder %s152, %s154
      %p161 = scmp.eq.s32.totalorder %s27, 8
      %p162 = por %p160, %p161
      %p163 = scmp.ne.s32.totalorder %s154, %s155
      %p164 = scmp.eq.s32.totalorder %s27, 0
      %p165 = por %p163, %p164
      %p166 = scmp.ne.s32.totalorder %s154, %s155
      %p167 = scmp.eq.s32.totalorder %s28, 8
      %p168 = por %p166, %p167
      %p170 = scmp.ne.s32.totalorder %s155, %s169
      %p171 = scmp.eq.s32.totalorder %s28, 0
      %p172 = por %p170, %p171
      %s174 = sadd.s32 %s173, 1
      %p177 = scmp.eq.s32.totalorder %s22, 8
      %p178 = scmp.ne.s32.totalorder %s173, %s175
      %p179 = scmp.eq.s32.totalorder %s22, 0
      %p180 = por %p178, %p179
      %p181 = scmp.ne.s32.totalorder %s173, %s175
      %p182 = scmp.eq.s32.totalorder %s27, 8
      %p183 = por %p181, %p182
      %p184 = scmp.ne.s32.totalorder %s175, %s176
      %p185 = scmp.eq.s32.totalorder %s27, 0
      %p186 = por %p184, %p185
      %p187 = scmp.ne.s32.totalorder %s175, %s176
      %p188 = scmp.eq.s32.totalorder %s28, 8
      %p189 = por %p187, %p188
      %p191 = scmp.ne.s32.totalorder %s176, %s190
      %p192 = scmp.eq.s32.totalorder %s28, 0
      %p193 = por %p191, %p192
      %s195 = sadd.s32 %s194, 1
      %p198 = scmp.eq.s32.totalorder %s22, 8
      %p199 = scmp.ne.s32.totalorder %s194, %s196
      %p200 = scmp.eq.s32.totalorder %s22, 0
      %p201 = por %p199, %p200
      %p202 = scmp.ne.s32.totalorder %s194, %s196
      %p203 = scmp.eq.s32.totalorder %s27, 8
      %p204 = por %p202, %p203
      %p205 = scmp.ne.s32.totalorder %s196, %s197
      %p206 = scmp.eq.s32.totalorder %s27, 0
      %p207 = por %p205, %p206
      %p208 = scmp.ne.s32.totalorder %s196, %s197
      %p209 = scmp.eq.s32.totalorder %s28, 8
      %p210 = por %p208, %p209
      %p212 = scmp.ne.s32.totalorder %s197, %s211
      %p213 = scmp.eq.s32.totalorder %s28, 0
      %p214 = por %p212, %p213
      %s215 = ssub.s32 %s30, %s37
      %p216 = scmp.eq.s32.totalorder %s215, 0
      %s218 = sadd.s32 %s217, 1
      %s219 = scalar_select %p216, %s217, %s218
      %p222 = pneg %p216
      %p223 = scmp.eq.s32.totalorder %s22, 8
      %p224 = por %p222, %p223
      %p225 = scmp.ne.s32.totalorder %s217, %s220
      %p226 = scmp.eq.s32.totalorder %s22, 0
      %p227 = por %p225, %p226
      %p228 = scmp.ne.s32.totalorder %s217, %s220
      %p229 = scmp.eq.s32.totalorder %s27, 8
      %p230 = por %p228, %p229
      %p231 = scmp.ne.s32.totalorder %s220, %s221
      %p232 = scmp.eq.s32.totalorder %s27, 0
      %p233 = por %p231, %p232
      %p234 = scmp.ne.s32.totalorder %s220, %s221
      %p235 = scmp.eq.s32.totalorder %s28, 8
      %p236 = por %p234, %p235
      %p238 = scmp.ne.s32.totalorder %s221, %s237
      %p239 = scmp.eq.s32.totalorder %s28, 0
      %p240 = por %p238, %p239
      %p241 = scmp.le.s32.totalorder 1, %s22
      %p242 = scmp.lt.s32.totalorder %s22, 10
      %p243 = pnand %p241, %p242
      %p244 = pneg %p243
      // Predicated region
      $region9: #{tpu_custom_call.1} parent=5 // pred_check
        _
      $region10: #{tpu_custom_call.1} parent=5 // pred_check_branch
        %246 = sbr.rel (%p243) target = $region12
      $region11: #{tpu_custom_call.1} parent=5 // pred_region
        %s247 = ssub.s32 %s22, 1
        // Predicated region
        $region13: #{tpu_custom_call.1} parent=11 // pred_check
          %p248 = pneg %p81
        $region14: #{tpu_custom_call.1} parent=11 // pred_check_branch
          %250 = sbr.rel (%p248) target = $region16
        $region15: #{tpu_custom_call.1} parent=11 // pred_region
          %s252 = ssub.s32 768, 768
          %253 = vsyncadd [#allocation9], %s252
          %s254 = sshll.u32 [#allocation8], 4
          %s255 = int_to_ptr.vmem [resolvable:$true] %s254
          %260 = dma.hbm_to_vmem [thread:$0]  %s1, 768, %s255, [#allocation9], 128, 128, 8
        $region16: #{tpu_custom_call.1} parent=11 // pred_fallthru
          _
        // Predicated region
        $region17: #{tpu_custom_call.1} parent=11 // pred_check
          %p261 = pneg %p102
        $region18: #{tpu_custom_call.1} parent=11 // pred_check_branch
          %263 = sbr.rel (%p261) target = $region20
        $region19: #{tpu_custom_call.1} parent=11 // pred_region
          %s265 = ssub.s32 2048, 2048
          %266 = vsyncadd [#allocation9], %s265
          %s267 = sshll.u32 [#allocation10], 4
          %s268 = int_to_ptr.vmem [resolvable:$true] %s267
          %273 = dma.hbm_to_vmem [thread:$0]  %s2, 2048, %s268, [#allocation9], 128, 128, 8
        $region20: #{tpu_custom_call.1} parent=11 // pred_fallthru
          _
        // Predicated region
        $region21: #{tpu_custom_call.1} parent=11 // pred_check
          %p274 = pneg %p123
        $region22: #{tpu_custom_call.1} parent=11 // pred_check_branch
          %276 = sbr.rel (%p274) target = $region24
        $region23: #{tpu_custom_call.1} parent=11 // pred_region
          _
        $region24: #{tpu_custom_call.1} parent=11 // pred_fallthru
          _
        // Predicated region
        $region25: #{tpu_custom_call.1} parent=11 // pred_check
          %p277 = pneg %p144
        $region26: #{tpu_custom_call.1} parent=11 // pred_check_branch
          %279 = sbr.rel (%p277) target = $region28
        $region27: #{tpu_custom_call.1} parent=11 // pred_region
          %s281 = ssub.s32 2048, 2048
          %282 = vsyncadd [#allocation12], %s281
          %s283 = sshll.u32 [#allocation11], 4
          %s284 = int_to_ptr.vmem [resolvable:$true] %s283
          %289 = dma.hbm_to_vmem [thread:$0]  %s4, 2048, %s284, [#allocation12], 128, 128, 8
        $region28: #{tpu_custom_call.1} parent=11 // pred_fallthru
          _
        // Predicated region
        $region29: #{tpu_custom_call.1} parent=11 // pred_check
          %p290 = pneg %p165
        $region30: #{tpu_custom_call.1} parent=11 // pred_check_branch
          %292 = sbr.rel (%p290) target = $region32
        $region31: #{tpu_custom_call.1} parent=11 // pred_region
          _
        $region32: #{tpu_custom_call.1} parent=11 // pred_fallthru
          _
        // Predicated region
        $region33: #{tpu_custom_call.1} parent=11 // pred_check
          %p293 = pneg %p186
        $region34: #{tpu_custom_call.1} parent=11 // pred_check_branch
          %295 = sbr.rel (%p293) target = $region36
        $region35: #{tpu_custom_call.1} parent=11 // pred_region
          %s297 = ssub.s32 2048, 2048
          %298 = vsyncadd [#allocation12], %s297
          %s299 = sshll.u32 [#allocation13], 4
          %s300 = int_to_ptr.vmem [resolvable:$true] %s299
          %305 = dma.hbm_to_vmem [thread:$0]  %s6, 2048, %s300, [#allocation12], 128, 128, 8
        $region36: #{tpu_custom_call.1} parent=11 // pred_fallthru
          _
        // Predicated region
        $region37: #{tpu_custom_call.1} parent=11 // pred_check
          %p306 = pneg %p207
        $region38: #{tpu_custom_call.1} parent=11 // pred_check_branch
          %308 = sbr.rel (%p306) target = $region40
        $region39: #{tpu_custom_call.1} parent=11 // pred_region
          _
        $region40: #{tpu_custom_call.1} parent=11 // pred_fallthru
          _
      $region12: #{tpu_custom_call.1} parent=5 // pred_fallthru
        _
      %p309 = scmp.lt.s32.totalorder %s22, 9
      // Predicated region
      $region41: #{tpu_custom_call.1} parent=5 // pred_check
        %p310 = pneg %p309
      $region42: #{tpu_custom_call.1} parent=5 // pred_check_branch
        %312 = sbr.rel (%p310) target = $region44
      $region43: #{tpu_custom_call.1} parent=5 // pred_region
        // Predicated region
        $region45: #{tpu_custom_call.1} parent=43 // pred_check
          %p313 = pneg %p54
        $region46: #{tpu_custom_call.1} parent=43 // pred_check_branch
          %315 = sbr.rel (%p313) target = $region48
        $region47: #{tpu_custom_call.1} parent=43 // pred_region
          %s316 = sand.u32 %s44, 1
          %s317 = scalar_lea.sflag [#allocation6], %s316
          %s318 = sand.u32 %s44, 1
          %s319 = smul.addr %s318, 8
          %s320 = scalar_lea.vmem [#allocation5], %s319
          %s321 = smul.u32 2, %s30
          %s323 = ssub.s32 128, 128
          %324 = vsyncadd %s317, %s323
          %s325 = smul.addr %s321, 64
          %s326 = scalar_lea.hbm %s0, %s325
          %s327 = sshll.u32 %s320, 4
          %s328 = int_to_ptr.vmem [resolvable:$true] %s327
          %333 = dma.hbm_to_vmem [thread:$0]  %s326, 128, %s328, %s317, 64, 64, 4
        $region48: #{tpu_custom_call.1} parent=43 // pred_fallthru
          _
      $region44: #{tpu_custom_call.1} parent=5 // pred_fallthru
        _
      %p334 = scmp.le.s32.totalorder 1, %s22
      %p335 = scmp.lt.s32.totalorder %s22, 10
      %p336 = pnand %p334, %p335
      %p337 = pneg %p336
      // Predicated region
      $region49: #{tpu_custom_call.1} parent=5 // pred_check
        _
      $region50: #{tpu_custom_call.1} parent=5 // pred_check_branch
        %339 = sbr.rel (%p336) target = $region52
      $region51: #{tpu_custom_call.1} parent=5 // pred_region
        %s340 = ssub.s32 %s22, 1
        %s341 = sand.u32 %s47, 1
        %s342 = scalar_lea.sflag [#allocation6], %s341
        %s343 = sand.u32 %s47, 1
        %s344 = smul.addr %s343, 8
        %s345 = scalar_lea.vmem [#allocation5], %s344
        // Predicated region
        $region53: #{tpu_custom_call.1} parent=51 // pred_check
          %p346 = pneg %p60
        $region54: #{tpu_custom_call.1} parent=51 // pred_check_branch
          %348 = sbr.rel (%p346) target = $region56
        $region55: #{tpu_custom_call.1} parent=51 // pred_region
          %349 = dma.done %s342, 128
        $region56: #{tpu_custom_call.1} parent=51 // pred_fallthru
          _
        // Predicated region
        $region57: #{tpu_custom_call.1} parent=51 // pred_check
          %p350 = pneg %p81
        $region58: #{tpu_custom_call.1} parent=51 // pred_check_branch
          %352 = sbr.rel (%p350) target = $region60
        $region59: #{tpu_custom_call.1} parent=51 // pred_region
          %353 = dma.done [#allocation9], 768
        $region60: #{tpu_custom_call.1} parent=51 // pred_fallthru
          _
        // Predicated region
        $region61: #{tpu_custom_call.1} parent=51 // pred_check
          %p354 = pneg %p102
        $region62: #{tpu_custom_call.1} parent=51 // pred_check_branch
          %356 = sbr.rel (%p354) target = $region64
        $region63: #{tpu_custom_call.1} parent=51 // pred_region
          %357 = dma.done [#allocation9], 2048
        $region64: #{tpu_custom_call.1} parent=51 // pred_fallthru
          _
        // Predicated region
        $region65: #{tpu_custom_call.1} parent=51 // pred_check
          %p358 = pneg %p144
        $region66: #{tpu_custom_call.1} parent=51 // pred_check_branch
          %360 = sbr.rel (%p358) target = $region68
        $region67: #{tpu_custom_call.1} parent=51 // pred_region
          %361 = dma.done [#allocation12], 2048
        $region68: #{tpu_custom_call.1} parent=51 // pred_fallthru
          _
        // Predicated region
        $region69: #{tpu_custom_call.1} parent=51 // pred_check
          %p362 = pneg %p186
        $region70: #{tpu_custom_call.1} parent=51 // pred_check_branch
          %364 = sbr.rel (%p362) target = $region72
        $region71: #{tpu_custom_call.1} parent=51 // pred_region
          %365 = dma.done [#allocation12], 2048
        $region72: #{tpu_custom_call.1} parent=51 // pred_fallthru
          _
        %s366 = sand.u32 %s47, 1
        %s367 = scalar_lea.sflag [#allocation6], %s366
        %s368 = sand.u32 %s47, 1
        %s369 = smul.addr %s368, 8
        %s370 = scalar_lea.vmem [#allocation5], %s369
        %p371 = pneg %p60
        %p372 = pneg %p57
        %p373 = pneg %p81
        %p374 = pneg %p78
        %p375 = pneg %p102
        %p376 = pneg %p99
        %p377 = pneg %p123
        %p378 = pneg %p120
        %p379 = pneg %p144
        %p380 = pneg %p141
        %p381 = pneg %p165
        %p382 = pneg %p162
        %p383 = pneg %p186
        %p384 = pneg %p183
        %p385 = pneg %p207
        %p386 = pneg %p204
        %p387 = pneg %p233
        %p388 = pneg %p230
        %s389 = sand.u32 %s220, 1
        %s390 = scalar_lea.sflag [#allocation7], %s389
        %s391 = sand.u32 %s220, 1
        %s392 = smul.addr %s391, 16
        %s393 = scalar_lea.vmem [#allocation14], %s392
        %s394 = smul.u32 2, %s32
        %s395 = smul.u32 2, %s32
        %p396 = scmp.eq.s32.totalorder %s31, 0
        %p397 = scmp.eq.s32.totalorder %s32, 0
        %p398 = pnand %p396, %p397
        %p399 = pneg %p398
        // Predicated region
        $region73: #{tpu_custom_call.1} parent=51 // pred_check
          _
        $region74: #{tpu_custom_call.1} parent=51 // pred_check_branch
          %401 = sbr.rel (%p398) target = $region76
        $region75: #{tpu_custom_call.1} parent=51 // pred_region
          %v402 = vld [vmem:[#allocation8] sm:$0xff]
          %v403 = vld [vmem:[#allocation8 + $0x8] sm:$0xff]
          %v404 = vld [vmem:[#allocation8 + $0x10] sm:$0xff]
          %v405 = vld [vmem:[#allocation8 + $0x18] sm:$0xff]
          %v406 = vld [vmem:[#allocation8 + $0x20] sm:$0xff]
          %v407 = vld [vmem:[#allocation8 + $0x28] sm:$0xff]
          %v408 = vld [vmem:[#allocation10] sm:$0xff]
          %v409 = vld [vmem:[#allocation10 + $0x8] sm:$0xff]
          %v410 = vld [vmem:[#allocation10 + $0x10] sm:$0xff]
          %v411 = vld [vmem:[#allocation10 + $0x18] sm:$0xff]
          %v412 = vld [vmem:[#allocation10 + $0x20] sm:$0xff]
          %v413 = vld [vmem:[#allocation10 + $0x28] sm:$0xff]
          %v414 = vld [vmem:[#allocation10 + $0x30] sm:$0xff]
          %v415 = vld [vmem:[#allocation10 + $0x38] sm:$0xff]
          %v416 = vld [vmem:[#allocation10 + $0x40] sm:$0xff]
          %v417 = vld [vmem:[#allocation10 + $0x48] sm:$0xff]
          %v418 = vld [vmem:[#allocation10 + $0x50] sm:$0xff]
          %v419 = vld [vmem:[#allocation10 + $0x58] sm:$0xff]
          %v420 = vld [vmem:[#allocation10 + $0x60] sm:$0xff]
          %v421 = vld [vmem:[#allocation10 + $0x68] sm:$0xff]
          %v422 = vld [vmem:[#allocation10 + $0x70] sm:$0xff]
          %v423 = vld [vmem:[#allocation10 + $0x78] sm:$0xff]
          %424 = vmatprep.subr.mxu0 0.0
          %425 = vmatpush1.msra.mxu0 %v408
          %426 = vmatprep.subr.mxu0 0.0
          %427 = vmatpush1.msra.mxu0 %v409
          %428 = vmatprep.subr.mxu0 0.0
          %429 = vmatpush1.msra.mxu0 %v410
          %430 = vmatprep.subr.mxu0 0.0
          %431 = vmatpush1.msra.mxu0 %v411
          %432 = vmatprep.subr.mxu0 0.0
          %433 = vmatpush1.msra.mxu0 %v412
          %434 = vmatprep.subr.mxu0 0.0
          %435 = vmatpush1.msra.mxu0 %v413
          %436 = vmatprep.subr.mxu0 0.0
          %437 = vmatpush1.msra.mxu0 %v414
          %438 = vmatprep.subr.mxu0 0.0
          %439 = vmatpush1.msra.mxu0 %v415
          %440 = vmatprep.subr.mxu0 0.0
          %441 = vmatpush1.msra.mxu0 %v416
          %442 = vmatprep.subr.mxu0 0.0
          %443 = vmatpush1.msra.mxu0 %v417
          %444 = vmatprep.subr.mxu0 0.0
          %445 = vmatpush1.msra.mxu0 %v418
          %446 = vmatprep.subr.mxu0 0.0
          %447 = vmatpush1.msra.mxu0 %v419
          %448 = vmatprep.subr.mxu0 0.0
          %449 = vmatpush1.msra.mxu0 %v420
          %450 = vmatprep.subr.mxu0 0.0
          %451 = vmatpush1.msra.mxu0 %v421
          %452 = vmatprep.subr.mxu0 0.0
          %453 = vmatpush1.msra.mxu0 %v422
          %454 = vmatprep.subr.mxu0 0.0
          %455 = vmatpush1.msra.mxu0 %v423
          %456 = vmatprep.subr.mxu0 0.0
          %457 = vmatpush1.msra.mxu0 0.0
          %458 = vmatprep.subr.mxu0 0.0
          %459 = vmatpush1.msra.mxu0 0.0
          %460 = vmatprep.subr.mxu0 0.0
          %461 = vmatpush1.msra.mxu0 0.0
          %462 = vmatprep.subr.mxu0 0.0
          %463 = vmatpush1.msra.mxu0 0.0
          %464 = vmatprep.subr.mxu0 0.0
          %465 = vmatpush1.msra.mxu0 0.0
          %466 = vmatprep.subr.mxu0 0.0
          %467 = vmatpush1.msra.mxu0 0.0
          %468 = vmatprep.subr.mxu0 0.0
          %469 = vmatpush1.msra.mxu0 0.0
          %470 = vmatprep.subr.mxu0 0.0
          %471 = vmatpush1.msra.mxu0 0.0
          %472 = vmatprep.subr.mxu0 0.0
          %473 = vmatpush1.msra.mxu0 0.0
          %474 = vmatprep.subr.mxu0 0.0
          %475 = vmatpush1.msra.mxu0 0.0
          %476 = vmatprep.subr.mxu0 0.0
          %477 = vmatpush1.msra.mxu0 0.0
          %478 = vmatprep.subr.mxu0 0.0
          %479 = vmatpush1.msra.mxu0 0.0
          %480 = vmatprep.subr.mxu0 0.0
          %481 = vmatpush1.msra.mxu0 0.0
          %482 = vmatprep.subr.mxu0 0.0
          %483 = vmatpush1.msra.mxu0 0.0
          %484 = vmatprep.subr.mxu0 0.0
          %485 = vmatpush1.msra.mxu0 0.0
          %486 = vmatprep.subr.mxu0 0.0
          %487 = vmatpush1.msra.mxu0 0.0
          %488 = vmatprep.mubr.f32.mxu0 0.0
          %489 = vmatmul.mubr.f32.gmra.mrb[0].mxu0 %v402
          %v490 = vpop.f32.mrb[0].mxu0
          %v491 = vadd.f32 0.0, %v490
          %v492 = vpop.f32.mrb[0].mxu0
          %493 = vmatprep.mubr.f32.mxu0 0.0
          %494 = vmatmul.mubr.f32.gmra.mrb[0].mxu0 %v403
          %v495 = vpop.f32.mrb[0].mxu0
          %v496 = vadd.f32 0.0, %v495
          %v497 = vpop.f32.mrb[0].mxu0
          %498 = vmatprep.mubr.f32.mxu0 0.0
          %499 = vmatmul.mubr.f32.gmra.mrb[0].mxu0 %v404
          %v500 = vpop.f32.mrb[0].mxu0
          %v501 = vadd.f32 0.0, %v500
          %v502 = vpop.f32.mrb[0].mxu0
          %503 = vmatprep.mubr.f32.mxu0 0.0
          %504 = vmatmul.mubr.f32.gmra.mrb[0].mxu0 %v405
          %v505 = vpop.f32.mrb[0].mxu0
          %v506 = vadd.f32 0.0, %v505
          %v507 = vpop.f32.mrb[0].mxu0
          %508 = vmatprep.mubr.f32.mxu0 0.0
          %509 = vmatmul.mubr.f32.gmra.mrb[0].mxu0 %v406
          %v510 = vpop.f32.mrb[0].mxu0
          %v511 = vadd.f32 0.0, %v510
          %v512 = vpop.f32.mrb[0].mxu0
          %513 = vmatprep.mubr.f32.mxu0 0.0
          %514 = vmatmul.mubr.f32.gmra.mrb[0].mxu0 %v407
          %v515 = vpop.f32.mrb[0].mxu0
          %v516 = vadd.f32 0.0, %v515
          %v517 = vpop.f32.mrb[0].mxu0
          %518 = vdwg.mxu0
          %519 = vst [vmem:[#allocation2] sm:$0xff] %v491
          %520 = vst [vmem:[#allocation2 + $0x8] sm:$0xff] %v496
          %521 = vst [vmem:[#allocation2 + $0x10] sm:$0xff] %v501
          %522 = vst [vmem:[#allocation2 + $0x18] sm:$0xff] %v506
          %523 = vst [vmem:[#allocation2 + $0x20] sm:$0xff] %v511
          %524 = vst [vmem:[#allocation2 + $0x28] sm:$0xff] %v516
        $region76: #{tpu_custom_call.1} parent=51 // pred_fallthru
          _
        %p525 = scmp.eq.s32.totalorder %s31, 1
        %p526 = pnand %p525, %p397
        %p527 = pneg %p526
        // Predicated region
        $region77: #{tpu_custom_call.1} parent=51 // pred_check
          _
        $region78: #{tpu_custom_call.1} parent=51 // pred_check_branch
          %529 = sbr.rel (%p526) target = $region80
        $region79: #{tpu_custom_call.1} parent=51 // pred_region
          %v530 = vld [vmem:[#allocation3] sm:$0xff]
          %v531 = vld [vmem:[#allocation3 + $0x8] sm:$0xff]
          %v532 = vld [vmem:[#allocation3 + $0x10] sm:$0xff]
          %v533 = vld [vmem:[#allocation3 + $0x18] sm:$0xff]
          %v534 = vld [vmem:[#allocation3 + $0x20] sm:$0xff]
          %v535 = vld [vmem:[#allocation3 + $0x28] sm:$0xff]
          %v536 = vld [vmem:[#allocation11] sm:$0xff]
          %v537 = vld [vmem:[#allocation11 + $0x8] sm:$0xff]
          %v538 = vld [vmem:[#allocation11 + $0x10] sm:$0xff]
          %v539 = vld [vmem:[#allocation11 + $0x18] sm:$0xff]
          %v540 = vld [vmem:[#allocation11 + $0x20] sm:$0xff]
          %v541 = vld [vmem:[#allocation11 + $0x28] sm:$0xff]
          %v542 = vld [vmem:[#allocation11 + $0x30] sm:$0xff]
          %v543 = vld [vmem:[#allocation11 + $0x38] sm:$0xff]
          %v544 = vld [vmem:[#allocation11 + $0x40] sm:$0xff]
          %v545 = vld [vmem:[#allocation11 + $0x48] sm:$0xff]
          %v546 = vld [vmem:[#allocation11 + $0x50] sm:$0xff]
          %v547 = vld [vmem:[#allocation11 + $0x58] sm:$0xff]
          %v548 = vld [vmem:[#allocation11 + $0x60] sm:$0xff]
          %v549 = vld [vmem:[#allocation11 + $0x68] sm:$0xff]
          %v550 = vld [vmem:[#allocation11 + $0x70] sm:$0xff]
          %v551 = vld [vmem:[#allocation11 + $0x78] sm:$0xff]
          %552 = vmatprep.subr.mxu0 0.0
          %553 = vmatpush1.msra.mxu0 %v536
          %554 = vmatprep.subr.mxu0 0.0
          %555 = vmatpush1.msra.mxu0 %v537
          %556 = vmatprep.subr.mxu0 0.0
          %557 = vmatpush1.msra.mxu0 %v538
          %558 = vmatprep.subr.mxu0 0.0
          %559 = vmatpush1.msra.mxu0 %v539
          %560 = vmatprep.subr.mxu0 0.0
          %561 = vmatpush1.msra.mxu0 %v540
          %562 = vmatprep.subr.mxu0 0.0
          %563 = vmatpush1.msra.mxu0 %v541
          %564 = vmatprep.subr.mxu0 0.0
          %565 = vmatpush1.msra.mxu0 %v542
          %566 = vmatprep.subr.mxu0 0.0
          %567 = vmatpush1.msra.mxu0 %v543
          %568 = vmatprep.subr.mxu0 0.0
          %569 = vmatpush1.msra.mxu0 %v544
          %570 = vmatprep.subr.mxu0 0.0
          %571 = vmatpush1.msra.mxu0 %v545
          %572 = vmatprep.subr.mxu0 0.0
          %573 = vmatpush1.msra.mxu0 %v546
          %574 = vmatprep.subr.mxu0 0.0
          %575 = vmatpush1.msra.mxu0 %v547
          %576 = vmatprep.subr.mxu0 0.0
          %577 = vmatpush1.msra.mxu0 %v548
          %578 = vmatprep.subr.mxu0 0.0
          %579 = vmatpush1.msra.mxu0 %v549
          %580 = vmatprep.subr.mxu0 0.0
          %581 = vmatpush1.msra.mxu0 %v550
          %582 = vmatprep.subr.mxu0 0.0
          %583 = vmatpush1.msra.mxu0 %v551
          %584 = vmatprep.subr.mxu0 0.0
          %585 = vmatpush1.msra.mxu0 0.0
          %586 = vmatprep.subr.mxu0 0.0
          %587 = vmatpush1.msra.mxu0 0.0
          %588 = vmatprep.subr.mxu0 0.0
          %589 = vmatpush1.msra.mxu0 0.0
          %590 = vmatprep.subr.mxu0 0.0
          %591 = vmatpush1.msra.mxu0 0.0
          %592 = vmatprep.subr.mxu0 0.0
          %593 = vmatpush1.msra.mxu0 0.0
          %594 = vmatprep.subr.mxu0 0.0
          %595 = vmatpush1.msra.mxu0 0.0
          %596 = vmatprep.subr.mxu0 0.0
          %597 = vmatpush1.msra.mxu0 0.0
          %598 = vmatprep.subr.mxu0 0.0
          %599 = vmatpush1.msra.mxu0 0.0
          %600 = vmatprep.subr.mxu0 0.0
          %601 = vmatpush1.msra.mxu0 0.0
          %602 = vmatprep.subr.mxu0 0.0
          %603 = vmatpush1.msra.mxu0 0.0
          %604 = vmatprep.subr.mxu0 0.0
          %605 = vmatpush1.msra.mxu0 0.0
          %606 = vmatprep.subr.mxu0 0.0
          %607 = vmatpush1.msra.mxu0 0.0
          %608 = vmatprep.subr.mxu0 0.0
          %609 = vmatpush1.msra.mxu0 0.0
          %610 = vmatprep.subr.mxu0 0.0
          %611 = vmatpush1.msra.mxu0 0.0
          %612 = vmatprep.subr.mxu0 0.0
          %613 = vmatpush1.msra.mxu0 0.0
          %614 = vmatprep.subr.mxu0 0.0
          %615 = vmatpush1.msra.mxu0 0.0
          %616 = vmatprep.mubr.f32.mxu0 0.0
          %617 = vmatmul.mubr.f32.gmra.mrb[0].mxu0 %v530
          %v618 = vpop.f32.mrb[0].mxu0
          %v619 = vadd.f32 0.0, %v618
          %v620 = vpop.f32.mrb[0].mxu0
          %621 = vmatprep.mubr.f32.mxu0 0.0
          %622 = vmatmul.mubr.f32.gmra.mrb[0].mxu0 %v531
          %v623 = vpop.f32.mrb[0].mxu0
          %v624 = vadd.f32 0.0, %v623
          %v625 = vpop.f32.mrb[0].mxu0
          %626 = vmatprep.mubr.f32.mxu0 0.0
          %627 = vmatmul.mubr.f32.gmra.mrb[0].mxu0 %v532
          %v628 = vpop.f32.mrb[0].mxu0
          %v629 = vadd.f32 0.0, %v628
          %v630 = vpop.f32.mrb[0].mxu0
          %631 = vmatprep.mubr.f32.mxu0 0.0
          %632 = vmatmul.mubr.f32.gmra.mrb[0].mxu0 %v533
          %v633 = vpop.f32.mrb[0].mxu0
          %v634 = vadd.f32 0.0, %v633
          %v635 = vpop.f32.mrb[0].mxu0
          %636 = vmatprep.mubr.f32.mxu0 0.0
          %637 = vmatmul.mubr.f32.gmra.mrb[0].mxu0 %v534
          %v638 = vpop.f32.mrb[0].mxu0
          %v639 = vadd.f32 0.0, %v638
          %v640 = vpop.f32.mrb[0].mxu0
          %641 = vmatprep.mubr.f32.mxu0 0.0
          %642 = vmatmul.mubr.f32.gmra.mrb[0].mxu0 %v535
          %v643 = vpop.f32.mrb[0].mxu0
          %v644 = vadd.f32 0.0, %v643
          %v645 = vpop.f32.mrb[0].mxu0
          %646 = vdwg.mxu0
          %647 = vst [vmem:[#allocation2] sm:$0xff] %v619
          %648 = vst [vmem:[#allocation2 + $0x8] sm:$0xff] %v624
          %649 = vst [vmem:[#allocation2 + $0x10] sm:$0xff] %v629
          %650 = vst [vmem:[#allocation2 + $0x18] sm:$0xff] %v634
          %651 = vst [vmem:[#allocation2 + $0x20] sm:$0xff] %v639
          %652 = vst [vmem:[#allocation2 + $0x28] sm:$0xff] %v644
        $region80: #{tpu_custom_call.1} parent=51 // pred_fallthru
          _
        %p653 = scmp.eq.s32.totalorder %s31, 2
        %p654 = pnand %p653, %p397
        %p655 = pneg %p654
        // Predicated region
        $region81: #{tpu_custom_call.1} parent=51 // pred_check
          _
        $region82: #{tpu_custom_call.1} parent=51 // pred_check_branch
          %657 = sbr.rel (%p654) target = $region84
        $region83: #{tpu_custom_call.1} parent=51 // pred_region
          %v658 = vld [vmem:[#allocation4] sm:$0xff]
          %v659 = vld [vmem:[#allocation4 + $0x8] sm:$0xff]
          %v660 = vld [vmem:[#allocation4 + $0x10] sm:$0xff]
          %v661 = vld [vmem:[#allocation4 + $0x18] sm:$0xff]
          %v662 = vld [vmem:[#allocation4 + $0x20] sm:$0xff]
          %v663 = vld [vmem:[#allocation4 + $0x28] sm:$0xff]
          %v664 = vld [vmem:[#allocation13] sm:$0xff]
          %v665 = vld [vmem:[#allocation13 + $0x8] sm:$0xff]
          %v666 = vld [vmem:[#allocation13 + $0x10] sm:$0xff]
          %v667 = vld [vmem:[#allocation13 + $0x18] sm:$0xff]
          %v668 = vld [vmem:[#allocation13 + $0x20] sm:$0xff]
          %v669 = vld [vmem:[#allocation13 + $0x28] sm:$0xff]
          %v670 = vld [vmem:[#allocation13 + $0x30] sm:$0xff]
          %v671 = vld [vmem:[#allocation13 + $0x38] sm:$0xff]
          %v672 = vld [vmem:[#allocation13 + $0x40] sm:$0xff]
          %v673 = vld [vmem:[#allocation13 + $0x48] sm:$0xff]
          %v674 = vld [vmem:[#allocation13 + $0x50] sm:$0xff]
          %v675 = vld [vmem:[#allocation13 + $0x58] sm:$0xff]
          %v676 = vld [vmem:[#allocation13 + $0x60] sm:$0xff]
          %v677 = vld [vmem:[#allocation13 + $0x68] sm:$0xff]
          %v678 = vld [vmem:[#allocation13 + $0x70] sm:$0xff]
          %v679 = vld [vmem:[#allocation13 + $0x78] sm:$0xff]
          %680 = vmatprep.subr.mxu0 0.0
          %681 = vmatpush1.msra.mxu0 %v664
          %682 = vmatprep.subr.mxu0 0.0
          %683 = vmatpush1.msra.mxu0 %v665
          %684 = vmatprep.subr.mxu0 0.0
          %685 = vmatpush1.msra.mxu0 %v666
          %686 = vmatprep.subr.mxu0 0.0
          %687 = vmatpush1.msra.mxu0 %v667
          %688 = vmatprep.subr.mxu0 0.0
          %689 = vmatpush1.msra.mxu0 %v668
          %690 = vmatprep.subr.mxu0 0.0
          %691 = vmatpush1.msra.mxu0 %v669
          %692 = vmatprep.subr.mxu0 0.0
          %693 = vmatpush1.msra.mxu0 %v670
          %694 = vmatprep.subr.mxu0 0.0
          %695 = vmatpush1.msra.mxu0 %v671
          %696 = vmatprep.subr.mxu0 0.0
          %697 = vmatpush1.msra.mxu0 %v672
          %698 = vmatprep.subr.mxu0 0.0
          %699 = vmatpush1.msra.mxu0 %v673
          %700 = vmatprep.subr.mxu0 0.0
          %701 = vmatpush1.msra.mxu0 %v674
          %702 = vmatprep.subr.mxu0 0.0
          %703 = vmatpush1.msra.mxu0 %v675
          %704 = vmatprep.subr.mxu0 0.0
          %705 = vmatpush1.msra.mxu0 %v676
          %706 = vmatprep.subr.mxu0 0.0
          %707 = vmatpush1.msra.mxu0 %v677
          %708 = vmatprep.subr.mxu0 0.0
          %709 = vmatpush1.msra.mxu0 %v678
          %710 = vmatprep.subr.mxu0 0.0
          %711 = vmatpush1.msra.mxu0 %v679
          %712 = vmatprep.subr.mxu0 0.0
          %713 = vmatpush1.msra.mxu0 0.0
          %714 = vmatprep.subr.mxu0 0.0
          %715 = vmatpush1.msra.mxu0 0.0
          %716 = vmatprep.subr.mxu0 0.0
          %717 = vmatpush1.msra.mxu0 0.0
          %718 = vmatprep.subr.mxu0 0.0
          %719 = vmatpush1.msra.mxu0 0.0
          %720 = vmatprep.subr.mxu0 0.0
          %721 = vmatpush1.msra.mxu0 0.0
          %722 = vmatprep.subr.mxu0 0.0
          %723 = vmatpush1.msra.mxu0 0.0
          %724 = vmatprep.subr.mxu0 0.0
          %725 = vmatpush1.msra.mxu0 0.0
          %726 = vmatprep.subr.mxu0 0.0
          %727 = vmatpush1.msra.mxu0 0.0
          %728 = vmatprep.subr.mxu0 0.0
          %729 = vmatpush1.msra.mxu0 0.0
          %730 = vmatprep.subr.mxu0 0.0
          %731 = vmatpush1.msra.mxu0 0.0
          %732 = vmatprep.subr.mxu0 0.0
          %733 = vmatpush1.msra.mxu0 0.0
          %734 = vmatprep.subr.mxu0 0.0
          %735 = vmatpush1.msra.mxu0 0.0
          %736 = vmatprep.subr.mxu0 0.0
          %737 = vmatpush1.msra.mxu0 0.0
          %738 = vmatprep.subr.mxu0 0.0
          %739 = vmatpush1.msra.mxu0 0.0
          %740 = vmatprep.subr.mxu0 0.0
          %741 = vmatpush1.msra.mxu0 0.0
          %742 = vmatprep.subr.mxu0 0.0
          %743 = vmatpush1.msra.mxu0 0.0
          %744 = vmatprep.mubr.f32.mxu0 0.0
          %745 = vmatmul.mubr.f32.gmra.mrb[0].mxu0 %v658
          %v746 = vpop.f32.mrb[0].mxu0
          %v747 = vadd.f32 0.0, %v746
          %v748 = vpop.f32.mrb[0].mxu0
          %749 = vmatprep.mubr.f32.mxu0 0.0
          %750 = vmatmul.mubr.f32.gmra.mrb[0].mxu0 %v659
          %v751 = vpop.f32.mrb[0].mxu0
          %v752 = vadd.f32 0.0, %v751
          %v753 = vpop.f32.mrb[0].mxu0
          %754 = vmatprep.mubr.f32.mxu0 0.0
          %755 = vmatmul.mubr.f32.gmra.mrb[0].mxu0 %v660
          %v756 = vpop.f32.mrb[0].mxu0
          %v757 = vadd.f32 0.0, %v756
          %v758 = vpop.f32.mrb[0].mxu0
          %759 = vmatprep.mubr.f32.mxu0 0.0
          %760 = vmatmul.mubr.f32.gmra.mrb[0].mxu0 %v661
          %v761 = vpop.f32.mrb[0].mxu0
          %v762 = vadd.f32 0.0, %v761
          %v763 = vpop.f32.mrb[0].mxu0
          %764 = vmatprep.mubr.f32.mxu0 0.0
          %765 = vmatmul.mubr.f32.gmra.mrb[0].mxu0 %v662
          %v766 = vpop.f32.mrb[0].mxu0
          %v767 = vadd.f32 0.0, %v766
          %v768 = vpop.f32.mrb[0].mxu0
          %769 = vmatprep.mubr.f32.mxu0 0.0
          %770 = vmatmul.mubr.f32.gmra.mrb[0].mxu0 %v663
          %v771 = vpop.f32.mrb[0].mxu0
          %v772 = vadd.f32 0.0, %v771
          %v773 = vpop.f32.mrb[0].mxu0
          %774 = vdwg.mxu0
          %775 = vst [vmem:[#allocation2] sm:$0xff] %v747
          %776 = vst [vmem:[#allocation2 + $0x8] sm:$0xff] %v752
          %777 = vst [vmem:[#allocation2 + $0x10] sm:$0xff] %v757
          %778 = vst [vmem:[#allocation2 + $0x18] sm:$0xff] %v762
          %779 = vst [vmem:[#allocation2 + $0x20] sm:$0xff] %v767
          %780 = vst [vmem:[#allocation2 + $0x28] sm:$0xff] %v772
        $region84: #{tpu_custom_call.1} parent=51 // pred_fallthru
          _
        %v781 = vld [vmem:[%s345] sm:$0xf]
        %v782 = vld [vmem:[%s345 + $0x4] sm:$0xf]
        %v783 = vunpack.c.l.bf16 %v781
        %v784 = vunpack.c.l.bf16 %v782
        %v785 = vld [vmem:[#allocation2] sm:$0xff]
        %v786 = vld [vmem:[#allocation2 + $0x8] sm:$0xff]
        %v787 = vld [vmem:[#allocation2 + $0x10] sm:$0xff]
        %v788 = vld [vmem:[#allocation2 + $0x18] sm:$0xff]
        %v789 = vld [vmem:[#allocation2 + $0x20] sm:$0xff]
        %v790 = vld [vmem:[#allocation2 + $0x28] sm:$0xff]
        %v791 = vld [vmem:[%s3] sm:$0x1]
        %v792 = vld [vmem:[%s5] sm:$0x1]
        %v793 = vld [vmem:[%s7] sm:$0x1]
        %s794 = scalar_select %p525, 1, 0
        %v795 = vstv %s794
        %vm796 = vcmp.eq.s32.totalorder %v795, 1
        %v797 = vsel %vm796, %v792, %v793
        %s798 = scalar_select %p396, 1, 0
        %v799 = vstv %s798
        %vm800 = vcmp.eq.s32.totalorder %v799, 1
        %v801 = vsel %vm800, %v791, %v797
        %v803 = vlaneseq
        %v804 = vshrl.u32 %v803, 7
        %v805 = vsub.s32 0, %v804
        %v806 = vrot.slane %v801, %v805
        %vm808 = vcmask 392192
        %v810 = vsel %vm808, %v783, 0
        %v813 = vsel %vm808, %v784, 0
        %815 = vmatprep.subr.mxu0 0.0
        %816 = vmatpush1.msra.mxu0 %v785
        %817 = vmatprep.subr.mxu0 0.0
        %818 = vmatpush1.msra.mxu0 %v786
        %819 = vmatprep.subr.mxu0 0.0
        %820 = vmatpush1.msra.mxu0 %v787
        %821 = vmatprep.subr.mxu0 0.0
        %822 = vmatpush1.msra.mxu0 %v788
        %823 = vmatprep.subr.mxu0 0.0
        %824 = vmatpush1.msra.mxu0 %v789
        %825 = vmatprep.subr.mxu0 0.0
        %826 = vmatpush1.msra.mxu0 %v790
        %827 = vmatprep.subr.mxu0 0.0
        %828 = vmatpush1.msra.mxu0 0.0
        %829 = vmatprep.subr.mxu0 0.0
        %830 = vmatpush1.msra.mxu0 0.0
        %831 = vmatprep.subr.mxu0 0.0
        %832 = vmatpush1.msra.mxu0 0.0
        %833 = vmatprep.subr.mxu0 0.0
        %834 = vmatpush1.msra.mxu0 0.0
        %835 = vmatprep.subr.mxu0 0.0
        %836 = vmatpush1.msra.mxu0 0.0
        %837 = vmatprep.subr.mxu0 0.0
        %838 = vmatpush1.msra.mxu0 0.0
        %839 = vmatprep.subr.mxu0 0.0
        %840 = vmatpush1.msra.mxu0 0.0
        %841 = vmatprep.subr.mxu0 0.0
        %842 = vmatpush1.msra.mxu0 0.0
        %843 = vmatprep.subr.mxu0 0.0
        %844 = vmatpush1.msra.mxu0 0.0
        %845 = vmatprep.subr.mxu0 0.0
        %846 = vmatpush1.msra.mxu0 0.0
        %847 = vmatprep.subr.mxu0 0.0
        %848 = vmatpush1.msra.mxu0 0.0
        %849 = vmatprep.subr.mxu0 0.0
        %850 = vmatpush1.msra.mxu0 0.0
        %851 = vmatprep.subr.mxu0 0.0
        %852 = vmatpush1.msra.mxu0 0.0
        %853 = vmatprep.subr.mxu0 0.0
        %854 = vmatpush1.msra.mxu0 0.0
        %855 = vmatprep.subr.mxu0 0.0
        %856 = vmatpush1.msra.mxu0 0.0
        %857 = vmatprep.subr.mxu0 0.0
        %858 = vmatpush1.msra.mxu0 0.0
        %859 = vmatprep.subr.mxu0 0.0
        %860 = vmatpush1.msra.mxu0 0.0
        %861 = vmatprep.subr.mxu0 0.0
        %862 = vmatpush1.msra.mxu0 0.0
        %863 = vmatprep.subr.mxu0 0.0
        %864 = vmatpush1.msra.mxu0 0.0
        %865 = vmatprep.subr.mxu0 0.0
        %866 = vmatpush1.msra.mxu0 0.0
        %867 = vmatprep.subr.mxu0 0.0
        %868 = vmatpush1.msra.mxu0 0.0
        %869 = vmatprep.subr.mxu0 0.0
        %870 = vmatpush1.msra.mxu0 0.0
        %871 = vmatprep.subr.mxu0 0.0
        %872 = vmatpush1.msra.mxu0 0.0
        %873 = vmatprep.subr.mxu0 0.0
        %874 = vmatpush1.msra.mxu0 0.0
        %875 = vmatprep.subr.mxu0 0.0
        %876 = vmatpush1.msra.mxu0 0.0
        %877 = vmatprep.subr.mxu0 0.0
        %878 = vmatpush1.msra.mxu0 0.0
        %879 = vmatprep.mubr.f32.mxu0 0.0
        %880 = vmatmul.mubr.f32.gmra.mrb[0].mxu0 %v810
        %v881 = vpop.f32.mrb[0].mxu0
        %v882 = vadd.f32 %v806, %v881
        %v883 = vpop.f32.mrb[0].mxu0
        %884 = vmatprep.mubr.f32.mxu0 0.0
        %885 = vmatmul.mubr.f32.gmra.mrb[0].mxu0 %v813
        %v886 = vpop.f32.mrb[0].mxu0
        %v887 = vadd.f32 %v806, %v886
        %v888 = vpop.f32.mrb[0].mxu0
        %889 = vdwg.mxu0
        %p890 = scmp.lt.s32.totalorder %s31, 2
        %v891 = vmax.f32 %v882, 0.0
        %v892 = vmax.f32 %v887, 0.0
        %s893 = scalar_select %p890, 1, 0
        %v894 = vstv %s893
        %vm895 = vcmp.eq.s32.totalorder %v894, 1
        %v896 = vsel %vm895, %v891, %v882
        %v897 = vsel %vm895, %v892, %v887
        %s898 = smul.u32 %s32, 16
        // Predicated region
        $region85: #{tpu_custom_call.1} parent=51 // pred_check
          %p899 = pneg %p396
        $region86: #{tpu_custom_call.1} parent=51 // pred_check_branch
          %901 = sbr.rel (%p899) target = $region88
        $region87: #{tpu_custom_call.1} parent=51 // pred_region
          %s902 = scalar_lea.vmem [#allocation3], %s898
          %903 = vst [vmem:[%s902] sm:$0xff] %v896
          %904 = vst [vmem:[%s902 + $0x8] sm:$0xff] %v897
        $region88: #{tpu_custom_call.1} parent=51 // pred_fallthru
          _
        // Predicated region
        $region89: #{tpu_custom_call.1} parent=51 // pred_check
          %p905 = pneg %p525
        $region90: #{tpu_custom_call.1} parent=51 // pred_check_branch
          %907 = sbr.rel (%p905) target = $region92
        $region91: #{tpu_custom_call.1} parent=51 // pred_region
          %s908 = scalar_lea.vmem [#allocation4], %s898
          %909 = vst [vmem:[%s908] sm:$0xff] %v896
          %910 = vst [vmem:[%s908 + $0x8] sm:$0xff] %v897
        $region92: #{tpu_custom_call.1} parent=51 // pred_fallthru
          _
        %911 = vst [vmem:[%s393] sm:$0xff] %v896
        %912 = vst [vmem:[%s393 + $0x8] sm:$0xff] %v897
        %s913 = sand.u32 %s220, 1
        %s914 = scalar_lea.sflag [#allocation7], %s913
        %s915 = sand.u32 %s220, 1
        %s916 = smul.addr %s915, 16
        %s917 = scalar_lea.vmem [#allocation14], %s916
        // Predicated region
        $region93: #{tpu_custom_call.1} parent=51 // pred_check
          %p918 = pneg %p230
        $region94: #{tpu_custom_call.1} parent=51 // pred_check_branch
          %920 = sbr.rel (%p918) target = $region96
        $region95: #{tpu_custom_call.1} parent=51 // pred_region
          %s921 = smul.u32 2, %s32
          %s923 = ssub.s32 256, 256
          %924 = vsyncadd %s914, %s923
          %s925 = smul.addr %s921, 128
          %s926 = scalar_lea.hbm %s8, %s925
          %s927 = sshll.u32 %s917, 4
          %s928 = int_to_ptr.vmem [resolvable:$true] %s927
          %933 = dma.vmem_to_hbm [thread:$0]  %s928, 256, %s926, %s914, 128, 128, 8
        $region96: #{tpu_custom_call.1} parent=51 // pred_fallthru
          _
      $region52: #{tpu_custom_call.1} parent=5 // pred_fallthru
        _
      %p934 = scmp.le.s32.totalorder 2, %s22
      // Predicated region
      $region97: #{tpu_custom_call.1} parent=5 // pred_check
        %p935 = pneg %p934
      $region98: #{tpu_custom_call.1} parent=5 // pred_check_branch
        %937 = sbr.rel (%p935) target = $region100
      $region99: #{tpu_custom_call.1} parent=5 // pred_region
        %s938 = ssub.s32 %s22, 2
        // Predicated region
        $region101: #{tpu_custom_call.1} parent=99 // pred_check
          %p939 = pneg %p236
        $region102: #{tpu_custom_call.1} parent=99 // pred_check_branch
          %941 = sbr.rel (%p939) target = $region104
        $region103: #{tpu_custom_call.1} parent=99 // pred_region
          %s942 = sand.u32 %s221, 1
          %s943 = scalar_lea.sflag [#allocation7], %s942
          %s944 = sand.u32 %s221, 1
          %s945 = smul.addr %s944, 16
          %s946 = scalar_lea.vmem [#allocation14], %s945
          %947 = dma.done %s943, 256
        $region104: #{tpu_custom_call.1} parent=99 // pred_fallthru
          _
      $region100: #{tpu_custom_call.1} parent=5 // pred_fallthru
        _
    $region6: #{tpu_custom_call.1} parent=1 // loop_footer
      %s26 = sadd.s32 1, %s22
    $region7: #{tpu_custom_call.1} parent=1 // loop_footer_branch
      %21 = sbr.rel target = $region3
    $region8: #{tpu_custom_call.1} parent=1 // loop_exit
      _
    %948 = vsyncpa [#allocation6], 1
    %s949 = scalar_lea.sflag [#allocation6], 1
    %950 = vsyncpa %s949, 1
    %951 = vsyncpa [#allocation9], 1
    %952 = vsyncpa [#allocation12], 1
    %953 = vsyncpa [#allocation7], 1
    %s954 = scalar_lea.sflag [#allocation7], 1
    %955 = vsyncpa %s954, 1

</llo_original>
